<compile_context>
chip_gen: v6e
topology: v6e:2x2x1
jax: 0.10.0
libtpu: 0.0.40
codegen_flags: <defaults>
</compile_context>

<pallas_src>
import jax
import jax.numpy as jnp
from jax.experimental import pallas as pl
from jax.experimental.pallas import tpu as pltpu

_LANE = 128


def _round_up(x, m):
    return ((x + m - 1) // m) * m


def _largest_divisor_leq(n, cap):
    cap = max(1, min(cap, n))
    for d in range(cap, 0, -1):
        if n % d == 0:
            return d
    return 1


def _vmem_limits():
    """Returns (vmem_limit_bytes for CompilerParams, block-sizing budget)."""
    try:
        cap = int(getattr(pltpu.get_tpu_info(), "vmem_capacity_bytes", 0) or 0)
    except Exception:
        cap = 0
    if cap <= 0:
        cap = 64 * 1024 * 1024                  # conservative fallback (v7x per-core VMEM)
    limit = min(cap // 2, 64 * 1024 * 1024)     # 64 MiB on v5e/v6e, 32 MiB on v7x
    budget = (limit * 3) // 4                   # headroom for compiler scratch/spills
    return limit, budget


def _pick_tile(s, max_lanes, cap):
    t = min(int(max_lanes), int(cap), _round_up(s, _LANE))
    t = (t // _LANE) * _LANE
    return max(_LANE, t)


def _lane_partial_sums_f32(xt):
    """Fold the last axis (length % 128 == 0) into (…, 128) f32 partial sums.

    Per-128-lane-chunk casts + elementwise VPU adds with an 8-way accumulator
    fan-out (breaks the dependency chain); no full-tile f32 temporary and no
    cross-lane (XLU) work here.
    """
    n = xt.shape[-1] // _LANE
    accs = []
    for k in range(n):
        c = xt[..., k * _LANE:(k + 1) * _LANE]
        if c.dtype != jnp.float32:
            c = c.astype(jnp.float32)
        if len(accs) < 8:
            accs.append(c)
        else:
            accs[k % 8] = accs[k % 8] + c
    out = accs[0]
    for a in accs[1:]:
        out = out + a
    return out


def _lane_sum_f32(xt):
    """f32 sum over the last axis (any length)."""
    L = xt.shape[-1]
    nfull = (L // _LANE) * _LANE
    total = None
    if nfull:
        total = jnp.sum(_lane_partial_sums_f32(xt[..., :nfull]), axis=-1)
    if L > nfull:
        rem = xt[..., nfull:]
        if rem.dtype != jnp.float32:
            rem = rem.astype(jnp.float32)
        r = jnp.sum(rem, axis=-1)
        total = r if total is None else total + r
    return total


def _gate_mlp(pooled, w1t, b1, w2t, b2):
    """pooled: (Bt, C) f32 -> sigmoid(fc2(leaky_relu(fc1(pooled))))."""
    h = jnp.dot(pooled, w1t, preferred_element_type=jnp.float32) + b1
    h = jnp.where(h >= 0.0, h, 0.01 * h)          # LeakyReLU(negative_slope=0.01)
    y = jnp.dot(h, w2t, preferred_element_type=jnp.float32) + b2
    return jax.nn.sigmoid(y)


def se_layer_3d(x, w1, b1, w2, b2, *, force_two_pass=False, spatial_tile=None):
    """x: (B, C, D, H, W). w1: (hid, C), b1: (hid,), w2: (C, hid), b2: (C,)."""
    B, C, D, H, W = x.shape
    hid = w1.shape[0]
    S = D * H * W

    x_flat = x.reshape(B, C, S)           # no HBM padding; ragged tiles are masked
    w1t = jnp.transpose(w1)               # (C, hid)
    w2t = jnp.transpose(w2)               # (hid, C)
    b1r = b1.reshape(1, hid)
    b2r = b2.reshape(1, C)
    inv_s = 1.0 / float(S)                # divide by the TRUE spatial size

    itemsize = jnp.dtype(x.dtype).itemsize
    vmem_limit, budget = _vmem_limits()

    bt_target = max(1, B // 2) if B > 1 else 1   # keep >=2 batch blocks for megacore

    # ---------------- fused single-pass path (slab resident in VMEM) ----------------
    # 2x in + 2x out double-buffered slabs + working-set margin per element.
    fused_per_elem = 5 * itemsize
    bt_fused_cap = budget // max(1, fused_per_elem * C * S)
    if bt_fused_cap >= 1 and not force_two_pass:
        Bt = _largest_divisor_leq(B, min(bt_target, int(bt_fused_cap)))
        n_bb = B // Bt

        def fused_kernel(x_ref, w1t_ref, b1_ref, w2t_ref, b2_ref, o_ref):
            xt = x_ref[...]                                      # (Bt, C, S)
            pooled = _lane_sum_f32(xt) * inv_s                   # (Bt, C) f32
            g = _gate_mlp(pooled, w1t_ref[...], b1_ref[...],
                          w2t_ref[...], b2_ref[...])             # (Bt, C) f32
            if g.dtype != xt.dtype:
                g = g.astype(xt.dtype)
            o_ref[...] = (xt * g[:, :, None]).astype(o_ref.dtype)

        out_flat = pl.pallas_call(
            fused_kernel,
            out_shape=jax.ShapeDtypeStruct((B, C, S), x.dtype),
            grid_spec=pltpu.PrefetchScalarGridSpec(
                num_scalar_prefetch=0,
                grid=(n_bb,),
                in_specs=[
                    pl.BlockSpec((Bt, C, S), lambda b: (b, 0, 0)),
                    pl.BlockSpec((C, hid), lambda b: (0, 0)),
                    pl.BlockSpec((1, hid), lambda b: (0, 0)),
                    pl.BlockSpec((hid, C), lambda b: (0, 0)),
                    pl.BlockSpec((1, C), lambda b: (0, 0)),
                ],
                out_specs=pl.BlockSpec((Bt, C, S), lambda b: (b, 0, 0)),
            ),
            compiler_params=pltpu.CompilerParams(
                dimension_semantics=("parallel",),
                vmem_limit_bytes=vmem_limit),
        )(x_flat, w1t, b1r, w2t, b2r)
        return out_flat.reshape(B, C, D, H, W)

    # ---------------- tiled two-pass path (large volumes) ----------------
    bt_tile_cap = budget // max(1, 4 * itemsize * C * _LANE)
    Bt = _largest_divisor_leq(B, min(bt_target, max(1, int(bt_tile_cap))))
    n_bb = B // Bt

    if spatial_tile is not None:
        ts_pool = ts_scale = max(_LANE, (int(spatial_tile) // _LANE) * _LANE)
    else:
        # pool pass: ~2 input buffers (+ masked-tile temp) live -> larger tiles
        ts_pool = _pick_tile(S, budget // max(1, 3 * itemsize * Bt * C), 32768)
        # scale pass: 2 input + 2 output buffers live
        ts_scale = _pick_tile(S, budget // max(1, 4 * itemsize * Bt * C), 65536)

    n_sp = pl.cdiv(S, ts_pool)
    n_ss = pl.cdiv(S, ts_scale)
    ragged_pool = (S % ts_pool) != 0

    # ---- kernel 1: spatial pooling (lane-partial f32 accumulator) + gate MLP ----
    def pool_gate_kernel(x_ref, w1t_ref, b1_ref, w2t_ref, b2_ref, gate_ref, acc_ref):
        s = pl.program_id(1)

        @pl.when(s == 0)
        def _():
            acc_ref[...] = jnp.zeros_like(acc_ref)

        xt = x_ref[...]                                          # (Bt, C, ts_pool)
        if ragged_pool:
            # Mask lanes past the true spatial extent (edge-block reads are garbage).
            lane = jax.lax.broadcasted_iota(jnp.int32, (1, 1, ts_pool), 2)
            valid = (lane + s * ts_pool) < S
            xt = jnp.where(valid, xt, jnp.zeros((), xt.dtype))
        acc_ref[...] += _lane_partial_sums_f32(xt)               # (Bt, C, 128) f32

        @pl.when(s == pl.num_programs(1) - 1)
        def _():
            pooled = jnp.sum(acc_ref[...], axis=-1) * inv_s      # (Bt, C)
            gate_ref[0] = _gate_mlp(pooled, w1t_ref[...], b1_ref[...],
                                    w2t_ref[...], b2_ref[...])

    gate = pl.pallas_call(
        pool_gate_kernel,
        out_shape=jax.ShapeDtypeStruct((n_bb, Bt, C), jnp.float32),
        grid_spec=pltpu.PrefetchScalarGridSpec(
            num_scalar_prefetch=0,
            grid=(n_bb, n_sp),                                   # reduction axis last
            in_specs=[
                pl.BlockSpec((Bt, C, ts_pool), lambda b, s: (b, 0, s)),
                pl.BlockSpec((C, hid), lambda b, s: (0, 0)),
                pl.BlockSpec((1, hid), lambda b, s: (0, 0)),
                pl.BlockSpec((hid, C), lambda b, s: (0, 0)),
                pl.BlockSpec((1, C), lambda b, s: (0, 0)),
            ],
            out_specs=pl.BlockSpec((1, Bt, C), lambda b, s: (b, 0, 0)),
            scratch_shapes=[pltpu.VMEM((Bt, C, _LANE), jnp.float32)],
        ),
        compiler_params=pltpu.CompilerParams(
            dimension_semantics=("parallel", "arbitrary"),
            vmem_limit_bytes=vmem_limit),
    )(x_flat, w1t, b1r, w2t, b2r)

    # ---- kernel 2: elementwise scale (fully parallel, ragged edge writes masked) ----
    def scale_kernel(x_ref, g_ref, o_ref):
        xv = x_ref[...]                                          # (Bt, C, ts_scale)
        g = g_ref[0]                                             # (Bt, C) f32
        if g.dtype != xv.dtype:
            g = g.astype(xv.dtype)
        o_ref[...] = (xv * g[:, :, None]).astype(o_ref.dtype)

    out_flat = pl.pallas_call(
        scale_kernel,
        out_shape=jax.ShapeDtypeStruct((B, C, S), x.dtype),
        grid_spec=pltpu.PrefetchScalarGridSpec(
            num_scalar_prefetch=0,
            grid=(n_bb, n_ss),
            in_specs=[
                pl.BlockSpec((Bt, C, ts_scale), lambda b, s: (b, 0, s)),
                pl.BlockSpec((1, Bt, C), lambda b, s: (b, 0, 0)),
            ],
            out_specs=pl.BlockSpec((Bt, C, ts_scale), lambda b, s: (b, 0, s)),
        ),
        compiler_params=pltpu.CompilerParams(
            dimension_semantics=("parallel", "parallel"),
            vmem_limit_bytes=vmem_limit),
    )(x_flat, gate)

    return out_flat.reshape(B, C, D, H, W)


def se_layer_3d_ref(x, w1, b1, w2, b2):
    """Pure-JAX reference for correctness checking."""
    B, C = x.shape[0], x.shape[1]
    y = jnp.mean(x, axis=(2, 3, 4))                  # (B, C)
    h = y @ w1.T + b1
    h = jnp.where(h >= 0, h, 0.01 * h)
    g = jax.nn.sigmoid(h @ w2.T + b2)                # (B, C)
    return x * g.reshape(B, C, 1, 1, 1)


if __name__ == "__main__":
    # Module-consistent small shapes: channel=30, reduction=15 -> hidden=2.
    C, reduction = 30, 15
    hid = C // reduction

    key = jax.random.PRNGKey(0)
    kx1, kx2, kw1, kb1, kw2, kb2 = jax.random.split(key, 6)

    # PyTorch-Linear-style init: U(-1/sqrt(fan_in), 1/sqrt(fan_in)).
    lim1 = 1.0 / (C ** 0.5)
    lim2 = 1.0 / (hid ** 0.5)
    w1 = jax.random.uniform(kw1, (hid, C), jnp.float32, -lim1, lim1)
    b1 = jax.random.uniform(kb1, (hid,), jnp.float32, -lim1, lim1)
    w2 = jax.random.uniform(kw2, (C, hid), jnp.float32, -lim2, lim2)
    b2 = jax.random.uniform(kb2, (C,), jnp.float32, -lim2, lim2)

    # 1) Small 128-aligned volume -> exercises the fused single-pass path.
    x1 = jax.random.normal(kx1, (2, C, 8, 8, 8), dtype=jnp.float32)
    out1 = jax.block_until_ready(se_layer_3d(x1, w1, b1, w2, b2))
    ref1 = se_layer_3d_ref(x1, w1, b1, w2, b2)
    assert out1.shape == x1.shape and out1.dtype == x1.dtype
    assert jnp.allclose(out1, ref1, atol=1e-5, rtol=1e-5), "fused path mismatch"

    # 2) Ragged (non-128-multiple) volume forced through the tiled two-pass
    #    path with small tiles -> exercises tail masking + partial edge writes.
    x2 = jax.random.normal(kx2, (2, C, 5, 7, 9), dtype=jnp.float32)
    out2 = jax.block_until_ready(
        se_layer_3d(x2, w1, b1, w2, b2, force_two_pass=True, spatial_tile=128))
    ref2 = se_layer_3d_ref(x2, w1, b1, w2, b2)
    assert out2.shape == x2.shape and out2.dtype == x2.dtype
    assert jnp.allclose(out2, ref2, atol=1e-5, rtol=1e-5), "tiled path mismatch"

    print("KERNEL_OK")
</pallas_src>

<mosaic_0001>
module attributes {stable_mosaic.version = 11 : i64} {
  func.func @fused_kernel(%arg0: i32, %arg1: memref<1x30x512xf32, #tpu.memory_space<vmem>>, %arg2: memref<30x2xf32, #tpu.memory_space<vmem>>, %arg3: memref<1x2xf32, #tpu.memory_space<vmem>>, %arg4: memref<2x30xf32, #tpu.memory_space<vmem>>, %arg5: memref<1x30xf32, #tpu.memory_space<vmem>>, %arg6: memref<1x30x512xf32, #tpu.memory_space<vmem>>) attributes {dimension_semantics = [#tpu.dimension_semantics<parallel>], iteration_bounds = array<i64: 2>, scalar_prefetch = 0 : i64, scratch_operands = 0 : i64, tpu.core_type = #tpu.core_type<tc>, window_params = [{transform_indices = @transform_0, window_bounds = array<i64: 1, 30, 512>}, {pipeline_mode = #tpu.pipeline_mode<synchronous>, transform_indices = @transform_1, window_bounds = array<i64: 30, 2>}, {pipeline_mode = #tpu.pipeline_mode<synchronous>, transform_indices = @transform_2, window_bounds = array<i64: 1, 2>}, {pipeline_mode = #tpu.pipeline_mode<synchronous>, transform_indices = @transform_3, window_bounds = array<i64: 2, 30>}, {pipeline_mode = #tpu.pipeline_mode<synchronous>, transform_indices = @transform_4, window_bounds = array<i64: 1, 30>}, {transform_indices = @transform_5, window_bounds = array<i64: 1, 30, 512>}]} {
    %c0 = arith.constant 0 : index
    %c0_0 = arith.constant 0 : index
    %c0_1 = arith.constant 0 : index
    %0 = vector.load %arg1[%c0, %c0_0, %c0_1] : memref<1x30x512xf32, #tpu.memory_space<vmem>>, vector<1x30x512xf32>
    %1 = vector.extract_strided_slice %0 {offsets = [0, 0, 0], sizes = [1, 30, 128], strides = [1, 1, 1]} : vector<1x30x512xf32> to vector<1x30x128xf32>
    %2 = vector.extract_strided_slice %0 {offsets = [0, 0, 128], sizes = [1, 30, 128], strides = [1, 1, 1]} : vector<1x30x512xf32> to vector<1x30x128xf32>
    %3 = vector.extract_strided_slice %0 {offsets = [0, 0, 256], sizes = [1, 30, 128], strides = [1, 1, 1]} : vector<1x30x512xf32> to vector<1x30x128xf32>
    %4 = vector.extract_strided_slice %0 {offsets = [0, 0, 384], sizes = [1, 30, 128], strides = [1, 1, 1]} : vector<1x30x512xf32> to vector<1x30x128xf32>
    %5 = arith.addf %1, %2 : vector<1x30x128xf32>
    %6 = arith.addf %5, %3 : vector<1x30x128xf32>
    %7 = arith.addf %6, %4 : vector<1x30x128xf32>
    %cst = arith.constant dense<0.000000e+00> : vector<1x30xf32>
    %8 = vector.multi_reduction <add>, %7, %cst [2] : vector<1x30x128xf32> to vector<1x30xf32>
    %cst_2 = arith.constant 0.001953125 : f32
    %9 = vector.broadcast %cst_2 : f32 to vector<1x30xf32>
    %10 = arith.mulf %8, %9 : vector<1x30xf32>
    %c0_3 = arith.constant 0 : index
    %c0_4 = arith.constant 0 : index
    %11 = vector.load %arg2[%c0_3, %c0_4] : memref<30x2xf32, #tpu.memory_space<vmem>>, vector<30x2xf32>
    %c0_5 = arith.constant 0 : index
    %c0_6 = arith.constant 0 : index
    %12 = vector.load %arg3[%c0_5, %c0_6] : memref<1x2xf32, #tpu.memory_space<vmem>>, vector<1x2xf32>
    %c0_7 = arith.constant 0 : index
    %c0_8 = arith.constant 0 : index
    %13 = vector.load %arg4[%c0_7, %c0_8] : memref<2x30xf32, #tpu.memory_space<vmem>>, vector<2x30xf32>
    %c0_9 = arith.constant 0 : index
    %c0_10 = arith.constant 0 : index
    %14 = vector.load %arg5[%c0_9, %c0_10] : memref<1x30xf32, #tpu.memory_space<vmem>>, vector<1x30xf32>
    %cst_11 = arith.constant dense<0.000000e+00> : vector<1x2xf32>
    %15 = tpu.matmul %10, %11, %cst_11 {dimension_numbers = #tpu.dot_dimension_numbers<[1], [0], [0], [1], [0, 0, 1, 1], [], []>} : vector<1x30xf32>, vector<30x2xf32>, vector<1x2xf32> -> vector<1x2xf32>
    %16 = arith.addf %15, %12 : vector<1x2xf32>
    %cst_12 = arith.constant 0.000000e+00 : f32
    %17 = vector.broadcast %cst_12 : f32 to vector<1x2xf32>
    %18 = arith.cmpf oge, %16, %17 : vector<1x2xf32>
    %cst_13 = arith.constant 0.00999999977 : f32
    %19 = vector.broadcast %cst_13 : f32 to vector<1x2xf32>
    %20 = arith.mulf %19, %16 : vector<1x2xf32>
    %21 = arith.select %18, %16, %20 : vector<1x2xi1>, vector<1x2xf32>
    %cst_14 = arith.constant dense<0.000000e+00> : vector<1x30xf32>
    %22 = tpu.matmul %21, %13, %cst_14 {dimension_numbers = #tpu.dot_dimension_numbers<[1], [0], [0], [1], [0, 0, 1, 1], [], []>} : vector<1x2xf32>, vector<2x30xf32>, vector<1x30xf32> -> vector<1x30xf32>
    %23 = arith.addf %22, %14 : vector<1x30xf32>
    %24 = arith.negf %23 : vector<1x30xf32>
    %25 = math.exp %24 : vector<1x30xf32>
    %cst_15 = arith.constant 1.000000e+00 : f32
    %26 = vector.broadcast %cst_15 : f32 to vector<1x30xf32>
    %27 = arith.addf %26, %25 : vector<1x30xf32>
    %28 = arith.divf %26, %27 : vector<1x30xf32>
    %29 = vector.shape_cast %28 : vector<1x30xf32> to vector<1x30x1xf32>
    %30 = vector.broadcast %29 : vector<1x30x1xf32> to vector<1x30x512xf32>
    %31 = arith.mulf %0, %30 : vector<1x30x512xf32>
    %c0_16 = arith.constant 0 : index
    %c0_17 = arith.constant 0 : index
    %c0_18 = arith.constant 0 : index
    %32 = vector.load %arg6[%c0_16, %c0_17, %c0_18] : memref<1x30x512xf32, #tpu.memory_space<vmem>>, vector<1x30x512xf32>
    tpu.vector_store %arg6[%c0_16, %c0_17, %c0_18], %31 {strides = array<i32>} : memref<1x30x512xf32, #tpu.memory_space<vmem>>, vector<1x30x512xf32>,
    return
  }
  func.func @transform_0(%arg0: i32) -> (i32, i32, i32) {
    %c0_i32 = arith.constant 0 : i32
    %c0_i32_0 = arith.constant 0 : i32
    %c0_i32_1 = arith.constant 0 : i32
    return %arg0, %c0_i32, %c0_i32_0 : i32, i32, i32
  }
  func.func @transform_1(%arg0: i32) -> (i32, i32) {
    %c0_i32 = arith.constant 0 : i32
    %c0_i32_0 = arith.constant 0 : i32
    %c0_i32_1 = arith.constant 0 : i32
    return %c0_i32, %c0_i32_0 : i32, i32
  }
  func.func @transform_2(%arg0: i32) -> (i32, i32) {
    %c0_i32 = arith.constant 0 : i32
    %c0_i32_0 = arith.constant 0 : i32
    %c0_i32_1 = arith.constant 0 : i32
    return %c0_i32, %c0_i32_0 : i32, i32
  }
  func.func @transform_3(%arg0: i32) -> (i32, i32) {
    %c0_i32 = arith.constant 0 : i32
    %c0_i32_0 = arith.constant 0 : i32
    %c0_i32_1 = arith.constant 0 : i32
    return %c0_i32, %c0_i32_0 : i32, i32
  }
  func.func @transform_4(%arg0: i32) -> (i32, i32) {
    %c0_i32 = arith.constant 0 : i32
    %c0_i32_0 = arith.constant 0 : i32
    %c0_i32_1 = arith.constant 0 : i32
    return %c0_i32, %c0_i32_0 : i32, i32
  }
  func.func @transform_5(%arg0: i32) -> (i32, i32, i32) {
    %c0_i32 = arith.constant 0 : i32
    %c0_i32_0 = arith.constant 0 : i32
    %c0_i32_1 = arith.constant 0 : i32
    return %arg0, %c0_i32, %c0_i32_0 : i32, i32, i32
  }
}

</mosaic_0001>

<llo_original>
// kernel: tpu_custom_call.1
$region0: #{tpu_custom_call.1}
  #allocation0 [shape = 'u32[]', space=smem, size = 0x4, offset = 0x4, fixed_abs, tag = 'smem constant byte address 0x4 - core index']
  #allocation1 [shape = 'u32[144,128]{1,0:T(1,128)}', space=vmem, size = 0x12000, scoped, tag = 'internal scratch']
  %s0 = inlined_call_operand.vmem [shape: f32[2,30,512], index: 0, kind: input, shape index: {}]
  %s1 = inlined_call_operand.vmem [shape: f32[30,2], index: 1, kind: input, shape index: {}]
  %s2 = inlined_call_operand.vmem [shape: f32[1,2], index: 2, kind: input, shape index: {}]
  %s3 = inlined_call_operand.vmem [shape: f32[2,30], index: 3, kind: input, shape index: {}]
  %s4 = inlined_call_operand.vmem [shape: f32[1,30], index: 4, kind: input, shape index: {}]
  %s5 = inlined_call_operand.vmem [shape: f32[2,30,512], index: 5, kind: output, shape index: {}]
  %s6 = sld [smem:[#allocation0]]
  $region53: #{tpu_custom_call.1} parent=0
    _
  %s8 = ssub.s32 1, %s6
  %s9 = scalar_select 0, %s8, %s6
  loop: start=0, step=1, limit=4
  $region2: #{tpu_custom_call.1} parent=0 // loop_pre_header
    _
  $region3: #{tpu_custom_call.1} parent=0 // loop_header
    %s11 = sphi 0, %s15
    %p12 = scmp.ge.s32.totalorder %s11, 4
    %s21 = sphi 0, %s23
    %s24 = sphi 0, %s21
    %s25 = sphi 0, %s24
    %s41 = sphi 0, %s25
    %s45 = sphi 0, %s45
    %s47 = sphi 0, %s45
    %s48 = sphi 0, %s47
    %s62 = sphi 0, %s48
    %s66 = sphi 0, %s66
    %s68 = sphi 0, %s66
    %s69 = sphi 0, %s68
    %s83 = sphi 0, %s69
    %s87 = sphi 0, %s87
    %s89 = sphi 0, %s87
    %s90 = sphi 0, %s89
    %s104 = sphi 0, %s90
    %s108 = sphi 0, %s108
    %s110 = sphi 0, %s108
    %s111 = sphi 0, %s110
    %s125 = sphi 0, %s111
    %s131 = sphi 0, %s133
    %s134 = sphi 0, %s131
    %s135 = sphi 0, %s134
    %s151 = sphi 0, %s135
  $region4: #{tpu_custom_call.1} parent=0 // loop_header_branch
    %14 = sbr.rel (%p12) target = $region8
  $region5: #{tpu_custom_call.1} parent=0 // loop_body
    %s16 = ssub.s32 %s11, 1
    %s17 = ssub.s32 %s11, 2
    %s18 = sadd.s32 %s11, 1
    %s19 = ssub.s32 %s11, %s18
    %p20 = scmp.eq.s32.totalorder %s19, 0
    %s22 = sadd.s32 %s21, 1
    %s23 = scalar_select %p20, %s21, %s22
    %p26 = pneg %p20
    %p27 = scmp.eq.s32.totalorder %s11, 1
    %p28 = por %p26, %p27
    %p29 = scmp.ne.s32.totalorder %s21, %s24
    %p30 = scmp.eq.s32.totalorder %s11, 0
    %p31 = por %p29, %p30
    %p32 = scmp.ne.s32.totalorder %s21, %s24
    %p33 = scmp.eq.s32.totalorder %s16, 1
    %p34 = por %p32, %p33
    %p35 = scmp.ne.s32.totalorder %s24, %s25
    %p36 = scmp.eq.s32.totalorder %s16, 0
    %p37 = por %p35, %p36
    %p38 = scmp.ne.s32.totalorder %s24, %s25
    %p39 = scmp.eq.s32.totalorder %s17, 1
    %p40 = por %p38, %p39
    %p42 = scmp.ne.s32.totalorder %s25, %s41
    %p43 = scmp.eq.s32.totalorder %s17, 0
    %p44 = por %p42, %p43
    %s46 = sadd.s32 %s45, 1
    %p49 = scmp.eq.s32.totalorder %s11, 1
    %p50 = scmp.ne.s32.totalorder %s45, %s47
    %p51 = scmp.eq.s32.totalorder %s11, 0
    %p52 = por %p50, %p51
    %p53 = scmp.ne.s32.totalorder %s45, %s47
    %p54 = scmp.eq.s32.totalorder %s16, 1
    %p55 = por %p53, %p54
    %p56 = scmp.ne.s32.totalorder %s47, %s48
    %p57 = scmp.eq.s32.totalorder %s16, 0
    %p58 = por %p56, %p57
    %p59 = scmp.ne.s32.totalorder %s47, %s48
    %p60 = scmp.eq.s32.totalorder %s17, 1
    %p61 = por %p59, %p60
    %p63 = scmp.ne.s32.totalorder %s48, %s62
    %p64 = scmp.eq.s32.totalorder %s17, 0
    %p65 = por %p63, %p64
    %s67 = sadd.s32 %s66, 1
    %p70 = scmp.eq.s32.totalorder %s11, 1
    %p71 = scmp.ne.s32.totalorder %s66, %s68
    %p72 = scmp.eq.s32.totalorder %s11, 0
    %p73 = por %p71, %p72
    %p74 = scmp.ne.s32.totalorder %s66, %s68
    %p75 = scmp.eq.s32.totalorder %s16, 1
    %p76 = por %p74, %p75
    %p77 = scmp.ne.s32.totalorder %s68, %s69
    %p78 = scmp.eq.s32.totalorder %s16, 0
    %p79 = por %p77, %p78
    %p80 = scmp.ne.s32.totalorder %s68, %s69
    %p81 = scmp.eq.s32.totalorder %s17, 1
    %p82 = por %p80, %p81
    %p84 = scmp.ne.s32.totalorder %s69, %s83
    %p85 = scmp.eq.s32.totalorder %s17, 0
    %p86 = por %p84, %p85
    %s88 = sadd.s32 %s87, 1
    %p91 = scmp.eq.s32.totalorder %s11, 1
    %p92 = scmp.ne.s32.totalorder %s87, %s89
    %p93 = scmp.eq.s32.totalorder %s11, 0
    %p94 = por %p92, %p93
    %p95 = scmp.ne.s32.totalorder %s87, %s89
    %p96 = scmp.eq.s32.totalorder %s16, 1
    %p97 = por %p95, %p96
    %p98 = scmp.ne.s32.totalorder %s89, %s90
    %p99 = scmp.eq.s32.totalorder %s16, 0
    %p100 = por %p98, %p99
    %p101 = scmp.ne.s32.totalorder %s89, %s90
    %p102 = scmp.eq.s32.totalorder %s17, 1
    %p103 = por %p101, %p102
    %p105 = scmp.ne.s32.totalorder %s90, %s104
    %p106 = scmp.eq.s32.totalorder %s17, 0
    %p107 = por %p105, %p106
    %s109 = sadd.s32 %s108, 1
    %p112 = scmp.eq.s32.totalorder %s11, 1
    %p113 = scmp.ne.s32.totalorder %s108, %s110
    %p114 = scmp.eq.s32.totalorder %s11, 0
    %p115 = por %p113, %p114
    %p116 = scmp.ne.s32.totalorder %s108, %s110
    %p117 = scmp.eq.s32.totalorder %s16, 1
    %p118 = por %p116, %p117
    %p119 = scmp.ne.s32.totalorder %s110, %s111
    %p120 = scmp.eq.s32.totalorder %s16, 0
    %p121 = por %p119, %p120
    %p122 = scmp.ne.s32.totalorder %s110, %s111
    %p123 = scmp.eq.s32.totalorder %s17, 1
    %p124 = por %p122, %p123
    %p126 = scmp.ne.s32.totalorder %s111, %s125
    %p127 = scmp.eq.s32.totalorder %s17, 0
    %p128 = por %p126, %p127
    %s129 = ssub.s32 %s11, %s18
    %p130 = scmp.eq.s32.totalorder %s129, 0
    %s132 = sadd.s32 %s131, 1
    %s133 = scalar_select %p130, %s131, %s132
    %p136 = pneg %p130
    %p137 = scmp.eq.s32.totalorder %s11, 1
    %p138 = por %p136, %p137
    %p139 = scmp.ne.s32.totalorder %s131, %s134
    %p140 = scmp.eq.s32.totalorder %s11, 0
    %p141 = por %p139, %p140
    %p142 = scmp.ne.s32.totalorder %s131, %s134
    %p143 = scmp.eq.s32.totalorder %s16, 1
    %p144 = por %p142, %p143
    %p145 = scmp.ne.s32.totalorder %s134, %s135
    %p146 = scmp.eq.s32.totalorder %s16, 0
    %p147 = por %p145, %p146
    %p148 = scmp.ne.s32.totalorder %s134, %s135
    %p149 = scmp.eq.s32.totalorder %s17, 1
    %p150 = por %p148, %p149
    %p152 = scmp.ne.s32.totalorder %s135, %s151
    %p153 = scmp.eq.s32.totalorder %s17, 0
    %p154 = por %p152, %p153
    %p155 = scmp.le.s32.totalorder 1, %s11
    %p156 = scmp.lt.s32.totalorder %s11, 3
    %p157 = pnand %p155, %p156
    %p158 = pneg %p157
    // Predicated region
    $region9: #{tpu_custom_call.1} parent=5 // pred_check
      _
    $region10: #{tpu_custom_call.1} parent=5 // pred_check_branch
      %160 = sbr.rel (%p157) target = $region12
    $region11: #{tpu_custom_call.1} parent=5 // pred_region
      %s161 = ssub.s32 %s11, 1
      // Predicated region
      $region13: #{tpu_custom_call.1} parent=11 // pred_check
        %p162 = pneg %p58
      $region14: #{tpu_custom_call.1} parent=11 // pred_check_branch
        %164 = sbr.rel (%p162) target = $region16
      $region15: #{tpu_custom_call.1} parent=11 // pred_region
        _
      $region16: #{tpu_custom_call.1} parent=11 // pred_fallthru
        _
      // Predicated region
      $region17: #{tpu_custom_call.1} parent=11 // pred_check
        %p165 = pneg %p79
      $region18: #{tpu_custom_call.1} parent=11 // pred_check_branch
        %167 = sbr.rel (%p165) target = $region20
      $region19: #{tpu_custom_call.1} parent=11 // pred_region
        _
      $region20: #{tpu_custom_call.1} parent=11 // pred_fallthru
        _
      // Predicated region
      $region21: #{tpu_custom_call.1} parent=11 // pred_check
        %p168 = pneg %p100
      $region22: #{tpu_custom_call.1} parent=11 // pred_check_branch
        %170 = sbr.rel (%p168) target = $region24
      $region23: #{tpu_custom_call.1} parent=11 // pred_region
        _
      $region24: #{tpu_custom_call.1} parent=11 // pred_fallthru
        _
      // Predicated region
      $region25: #{tpu_custom_call.1} parent=11 // pred_check
        %p171 = pneg %p121
      $region26: #{tpu_custom_call.1} parent=11 // pred_check_branch
        %173 = sbr.rel (%p171) target = $region28
      $region27: #{tpu_custom_call.1} parent=11 // pred_region
        _
      $region28: #{tpu_custom_call.1} parent=11 // pred_fallthru
        _
    $region12: #{tpu_custom_call.1} parent=5 // pred_fallthru
      _
    %p174 = scmp.lt.s32.totalorder %s11, 2
    // Predicated region
    $region29: #{tpu_custom_call.1} parent=5 // pred_check
      %p175 = pneg %p174
    $region30: #{tpu_custom_call.1} parent=5 // pred_check_branch
      %177 = sbr.rel (%p175) target = $region32
    $region31: #{tpu_custom_call.1} parent=5 // pred_region
      // Predicated region
      $region33: #{tpu_custom_call.1} parent=31 // pred_check
        %p178 = pneg %p31
      $region34: #{tpu_custom_call.1} parent=31 // pred_check_branch
        %180 = sbr.rel (%p178) target = $region36
      $region35: #{tpu_custom_call.1} parent=31 // pred_region
        %p181 = scmp.lt.s32.totalorder %s11, 1
        %s182 = scalar_select %p181, %s11, 1
        %s183 = smul.addr %s182, 16
        %s184 = smul.addr %s183, 8
        %s185 = scalar_lea.vmem %s0, %s184
      $region36: #{tpu_custom_call.1} parent=31 // pred_fallthru
        _
    $region32: #{tpu_custom_call.1} parent=5 // pred_fallthru
      _
    %p186 = scmp.le.s32.totalorder 1, %s11
    %p187 = scmp.lt.s32.totalorder %s11, 3
    %p188 = pnand %p186, %p187
    %p189 = pneg %p188
    // Predicated region
    $region37: #{tpu_custom_call.1} parent=5 // pred_check
      _
    $region38: #{tpu_custom_call.1} parent=5 // pred_check_branch
      %191 = sbr.rel (%p188) target = $region40
    $region39: #{tpu_custom_call.1} parent=5 // pred_region
      %s192 = ssub.s32 %s11, 1
      %p193 = scmp.lt.s32.totalorder %s16, 1
      %s194 = scalar_select %p193, %s16, 1
      %s195 = smul.addr %s194, 16
      %s196 = smul.addr %s195, 8
      %s197 = scalar_lea.vmem %s0, %s196
      %p198 = pneg %p37
      %p199 = pneg %p34
      %p200 = pneg %p58
      %p201 = pneg %p55
      %p202 = pneg %p79
      %p203 = pneg %p76
      %p204 = pneg %p100
      %p205 = pneg %p97
      %p206 = pneg %p121
      %p207 = pneg %p118
      %p208 = pneg %p147
      %p209 = pneg %p144
      %p210 = scmp.lt.s32.totalorder %s16, 1
      %s211 = scalar_select %p210, %s16, 1
      %s212 = smul.addr %s211, 16
      %s213 = smul.addr %s212, 8
      %s214 = scalar_lea.vmem %s5, %s213
      %p215 = scmp.lt.s32.totalorder %s16, 1
      %s216 = scalar_select %p215, %s16, 1
      %s217 = smul.addr %s216, 16
      %s218 = smul.addr %s217, 8
      %s219 = scalar_lea.vmem %s0, %s218
      %p220 = scmp.lt.s32.totalorder %s16, 1
      %s221 = scalar_select %p220, %s16, 1
      %s222 = smul.addr %s221, 16
      %s223 = smul.addr %s222, 8
      %s224 = scalar_lea.vmem %s5, %s223
      %v225 = vld [vmem:[%s219] sm:$0xff]
      %v226 = vld [vmem:[%s219 + $0x8] sm:$0xff]
      %v227 = vld [vmem:[%s219 + $0x10] sm:$0xff]
      %v228 = vld [vmem:[%s219 + $0x18] sm:$0xff]
      %v229 = vld [vmem:[%s219 + $0x20] sm:$0xff]
      %v230 = vld [vmem:[%s219 + $0x28] sm:$0xff]
      %v231 = vld [vmem:[%s219 + $0x30] sm:$0xff]
      %v232 = vld [vmem:[%s219 + $0x38] sm:$0xff]
      %v233 = vld [vmem:[%s219 + $0x40] sm:$0xff]
      %v234 = vld [vmem:[%s219 + $0x48] sm:$0xff]
      %v235 = vld [vmem:[%s219 + $0x50] sm:$0xff]
      %v236 = vld [vmem:[%s219 + $0x58] sm:$0xff]
      %v237 = vld [vmem:[%s219 + $0x60] sm:$0x3f]
      %v238 = vld [vmem:[%s219 + $0x68] sm:$0x3f]
      %v239 = vld [vmem:[%s219 + $0x70] sm:$0x3f]
      %v240 = vld [vmem:[%s219 + $0x78] sm:$0x3f]
      %v241 = vadd.f32 %v225, %v226
      %v242 = vadd.f32 %v229, %v230
      %v243 = vadd.f32 %v233, %v234
      %v244 = vadd.f32 %v237, %v238
      %v245 = vadd.f32 %v241, %v227
      %v246 = vadd.f32 %v242, %v231
      %v247 = vadd.f32 %v243, %v235
      %v248 = vadd.f32 %v244, %v239
      %v249 = vadd.f32 %v245, %v228
      %v250 = vadd.f32 %v246, %v232
      %v251 = vadd.f32 %v247, %v236
      %v252 = vadd.f32 %v248, %v240
      %253 = vadd.xlane.f32.xlu0 %v249
      %v254 = vpop.xlane.xlu0 %253
      %255 = vadd.xlane.f32.xlu0 %v250
      %v256 = vpop.xlane.xlu0 %255
      %257 = vadd.xlane.f32.xlu0 %v251
      %v258 = vpop.xlane.xlu0 %257
      %vm259 = vcmask 1045504
      %v260 = vsel %vm259, %v252, 0.0
      %261 = vadd.xlane.f32.xlu0 %v260
      %v262 = vpop.xlane.xlu0 %261
      %v263 = vmul.f32 %v254, 0.001953125
      %v264 = vmul.f32 %v256, 0.001953125
      %v265 = vmul.f32 %v258, 0.001953125
      %v266 = vmul.f32 %v262, 0.001953125
      %v267 = vld [vmem:[%s1] sm:$0xff]
      %v268 = vld [vmem:[%s1 + $0x8] sm:$0xff]
      %v269 = vld [vmem:[%s1 + $0x10] sm:$0xff]
      %v270 = vld [vmem:[%s1 + $0x18] sm:$0x3f]
      %v271 = vld [vmem:[%s2] sm:$0x1]
      %v272 = vld [vmem:[%s3] sm:$0x3]
      %v273 = vld [vmem:[%s4] sm:$0x1]
      %v278 = vlaneseq
      %v279 = vand.u32 %v278, 127
      %v280 = vlaneseq
      %v281 = vshrl.u32 %v280, 7
      %v282 = vsub.s32 %v279, %v281
      %v283 = vrot.slane %v263, %v282
      %v284 = vadd.s32 %v279, 4294967288
      %v285 = vlaneseq
      %v286 = vshrl.u32 %v285, 7
      %v287 = vsub.s32 %v284, %v286
      %v288 = vrot.slane %v264, %v287
      %vm289 = vcmask 130112
      %v290 = vsel %vm289, %v288, %v283
      %v291 = vadd.s32 %v279, 4294967280
      %v292 = vlaneseq
      %v293 = vshrl.u32 %v292, 7
      %v294 = vsub.s32 %v291, %v293
      %v295 = vrot.slane %v265, %v294
      %vm296 = vcmask 195712
      %v297 = vsel %vm296, %v295, %v290
      %v298 = vadd.s32 %v279, 4294967272
      %v299 = vlaneseq
      %v300 = vshrl.u32 %v299, 7
      %v301 = vsub.s32 %v298, %v300
      %v302 = vrot.slane %v266, %v301
      %vm303 = vcmask 261312
      %v304 = vsel %vm303, %v302, %v297
      %vm305 = vcmask 244736
      %v306 = vsel %vm305, %v304, 0
      %v309 = vsel %vm259, %v270, 0
      %311 = vmatprep.subr.mxu0 0.0
      %312 = vmatpush1.msra.mxu0 0.0
      %313 = vmatprep.subr.mxu0 0.0
      %314 = vmatpush1.msra.mxu0 0.0
      %315 = vmatprep.subr.mxu0 0.0
      %316 = vmatpush1.msra.mxu0 0.0
      %317 = vmatprep.subr.mxu0 0.0
      %318 = vmatpush1.msra.mxu0 0.0
      %319 = vmatprep.subr.mxu0 0.0
      %320 = vmatpush1.msra.mxu0 0.0
      %321 = vmatprep.subr.mxu0 0.0
      %322 = vmatpush1.msra.mxu0 0.0
      %323 = vmatprep.subr.mxu0 0.0
      %324 = vmatpush1.msra.mxu0 0.0
      %325 = vmatprep.subr.mxu0 0.0
      %326 = vmatpush1.msra.mxu0 0.0
      %327 = vmatprep.subr.mxu0 0.0
      %328 = vmatpush1.msra.mxu0 0.0
      %329 = vmatprep.subr.mxu0 0.0
      %330 = vmatpush1.msra.mxu0 0.0
      %331 = vmatprep.subr.mxu0 0.0
      %332 = vmatpush1.msra.mxu0 0.0
      %333 = vmatprep.subr.mxu0 0.0
      %334 = vmatpush1.msra.mxu0 0.0
      %335 = vmatprep.subr.mxu0 0.0
      %336 = vmatpush1.msra.mxu0 %v309
      %337 = vmatprep.subr.mxu0 0.0
      %338 = vmatpush1.msra.mxu0 %v269
      %339 = vmatprep.subr.mxu0 0.0
      %340 = vmatpush1.msra.mxu0 %v268
      %341 = vmatprep.subr.mxu0 0.0
      %342 = vmatpush1.msra.mxu0 %v267
      %343 = vmatprep.subr.mxu0 0.0
      %344 = vmatpush2.msra.mxu0 0.0
      %345 = vmatprep.subr.mxu0 0.0
      %346 = vmatpush2.msra.mxu0 0.0
      %347 = vmatprep.subr.mxu0 0.0
      %348 = vmatpush2.msra.mxu0 0.0
      %349 = vmatprep.subr.mxu0 0.0
      %350 = vmatpush2.msra.mxu0 0.0
      %351 = vmatprep.subr.mxu0 0.0
      %352 = vmatpush2.msra.mxu0 0.0
      %353 = vmatprep.subr.mxu0 0.0
      %354 = vmatpush2.msra.mxu0 0.0
      %355 = vmatprep.subr.mxu0 0.0
      %356 = vmatpush2.msra.mxu0 0.0
      %357 = vmatprep.subr.mxu0 0.0
      %358 = vmatpush2.msra.mxu0 0.0
      %359 = vmatprep.subr.mxu0 0.0
      %360 = vmatpush2.msra.mxu0 0.0
      %361 = vmatprep.subr.mxu0 0.0
      %362 = vmatpush2.msra.mxu0 0.0
      %363 = vmatprep.subr.mxu0 0.0
      %364 = vmatpush2.msra.mxu0 0.0
      %365 = vmatprep.subr.mxu0 0.0
      %366 = vmatpush2.msra.mxu0 0.0
      %367 = vmatprep.subr.mxu0 0.0
      %368 = vmatpush2.msra.mxu0 0.0
      %369 = vmatprep.subr.mxu0 0.0
      %370 = vmatpush2.msra.mxu0 0.0
      %371 = vmatprep.subr.mxu0 0.0
      %372 = vmatpush2.msra.mxu0 0.0
      %373 = vmatprep.subr.mxu0 0.0
      %374 = vmatpush2.msra.mxu0 0.0
      %375 = vmatprep.mubr.f32.mxu0 0.0
      %376 = vmatmul.mubr.f32.gmra.mxu0 %v306
      %v377 = vpop.f32.mrf.mxu0
      %v378 = vadd.f32 %v271, %v377
      %v379 = vpop.f32.mrf.mxu0
      %380 = vdwg.mxu0
      %vm381 = vcmp.ge.f32.partialorder %v378, 0.0
      %v382 = vmul.f32 %v378, 0.01
      %v383 = vsel %vm381, %v378, %v382
      %vm384 = vcmask 15360
      %v386 = vsel %vm384, %v383, 0
      %vm388 = vcmask 1041408
      %v390 = vsel %vm388, %v272, 0
      %392 = vmatprep.subr.mxu0 0.0
      %393 = vmatpush1.msra.mxu0 0.0
      %394 = vmatprep.subr.mxu0 0.0
      %395 = vmatpush1.msra.mxu0 0.0
      %396 = vmatprep.subr.mxu0 0.0
      %397 = vmatpush1.msra.mxu0 0.0
      %398 = vmatprep.subr.mxu0 0.0
      %399 = vmatpush1.msra.mxu0 0.0
      %400 = vmatprep.subr.mxu0 0.0
      %401 = vmatpush1.msra.mxu0 0.0
      %402 = vmatprep.subr.mxu0 0.0
      %403 = vmatpush1.msra.mxu0 0.0
      %404 = vmatprep.subr.mxu0 0.0
      %405 = vmatpush1.msra.mxu0 0.0
      %406 = vmatprep.subr.mxu0 0.0
      %407 = vmatpush1.msra.mxu0 0.0
      %408 = vmatprep.subr.mxu0 0.0
      %409 = vmatpush1.msra.mxu0 0.0
      %410 = vmatprep.subr.mxu0 0.0
      %411 = vmatpush1.msra.mxu0 0.0
      %412 = vmatprep.subr.mxu0 0.0
      %413 = vmatpush1.msra.mxu0 0.0
      %414 = vmatprep.subr.mxu0 0.0
      %415 = vmatpush1.msra.mxu0 0.0
      %416 = vmatprep.subr.mxu0 0.0
      %417 = vmatpush1.msra.mxu0 0.0
      %418 = vmatprep.subr.mxu0 0.0
      %419 = vmatpush1.msra.mxu0 0.0
      %420 = vmatprep.subr.mxu0 0.0
      %421 = vmatpush1.msra.mxu0 0.0
      %422 = vmatprep.subr.mxu0 0.0
      %423 = vmatpush1.msra.mxu0 %v390
      %424 = vmatprep.subr.mxu0 0.0
      %425 = vmatpush2.msra.mxu0 0.0
      %426 = vmatprep.subr.mxu0 0.0
      %427 = vmatpush2.msra.mxu0 0.0
      %428 = vmatprep.subr.mxu0 0.0
      %429 = vmatpush2.msra.mxu0 0.0
      %430 = vmatprep.subr.mxu0 0.0
      %431 = vmatpush2.msra.mxu0 0.0
      %432 = vmatprep.subr.mxu0 0.0
      %433 = vmatpush2.msra.mxu0 0.0
      %434 = vmatprep.subr.mxu0 0.0
      %435 = vmatpush2.msra.mxu0 0.0
      %436 = vmatprep.subr.mxu0 0.0
      %437 = vmatpush2.msra.mxu0 0.0
      %438 = vmatprep.subr.mxu0 0.0
      %439 = vmatpush2.msra.mxu0 0.0
      %440 = vmatprep.subr.mxu0 0.0
      %441 = vmatpush2.msra.mxu0 0.0
      %442 = vmatprep.subr.mxu0 0.0
      %443 = vmatpush2.msra.mxu0 0.0
      %444 = vmatprep.subr.mxu0 0.0
      %445 = vmatpush2.msra.mxu0 0.0
      %446 = vmatprep.subr.mxu0 0.0
      %447 = vmatpush2.msra.mxu0 0.0
      %448 = vmatprep.subr.mxu0 0.0
      %449 = vmatpush2.msra.mxu0 0.0
      %450 = vmatprep.subr.mxu0 0.0
      %451 = vmatpush2.msra.mxu0 0.0
      %452 = vmatprep.subr.mxu0 0.0
      %453 = vmatpush2.msra.mxu0 0.0
      %454 = vmatprep.subr.mxu0 0.0
      %455 = vmatpush2.msra.mxu0 0.0
      %456 = vmatprep.mubr.f32.mxu0 0.0
      %457 = vmatmul.mubr.f32.gmra.mxu0 %v386
      %v458 = vpop.f32.mrf.mxu0
      %v459 = vadd.f32 %v273, %v458
      %v460 = vpop.f32.mrf.mxu0
      %461 = vdwg.mxu0
      %v462 = vxor.u32 %v459, 2147483648
      %v463 = vmul.f32 %v462, 1.442695
      %v464 = vpow.pop %v463
      %v465 = vadd.f32 %v464, 1.0
      %v466 = vrcp.pop %v465
      %v467 = vmul.f32 1.0, %v466
      %v468 = vlaneseq
      %v469 = vshrl.u32 %v468, 7
      %v470 = vsub.s32 0, %v469
      %v471 = vrot.slane %v467, %v470
      %473 = vbcast.lane.b32.xlu0 %v471, 256
      %v474 = vpop.permute.xlu0 %473
      %s476 = sor.u32 256, 8
      %477 = vbcast.lane.b32.xlu0 %v471, %s476
      %v478 = vpop.permute.xlu0 %477
      %s480 = sor.u32 256, 16
      %481 = vbcast.lane.b32.xlu0 %v471, %s480
      %v482 = vpop.permute.xlu0 %481
      %s484 = sor.u32 256, 24
      %485 = vbcast.lane.b32.xlu0 %v471, %s484
      %v486 = vpop.permute.xlu0 %485
      %v487 = vmul.f32 %v225, %v474
      %v488 = vmul.f32 %v226, %v474
      %v489 = vmul.f32 %v227, %v474
      %v490 = vmul.f32 %v228, %v474
      %v491 = vmul.f32 %v229, %v478
      %v492 = vmul.f32 %v230, %v478
      %v493 = vmul.f32 %v231, %v478
      %v494 = vmul.f32 %v232, %v478
      %v495 = vmul.f32 %v233, %v482
      %v496 = vmul.f32 %v234, %v482
      %v497 = vmul.f32 %v235, %v482
      %v498 = vmul.f32 %v236, %v482
      %v499 = vmul.f32 %v237, %v486
      %v500 = vmul.f32 %v238, %v486
      %v501 = vmul.f32 %v239, %v486
      %v502 = vmul.f32 %v240, %v486
      %503 = vst [vmem:[%s224] sm:$0xff] %v487
      %504 = vst [vmem:[%s224 + $0x8] sm:$0xff] %v488
      %505 = vst [vmem:[%s224 + $0x10] sm:$0xff] %v489
      %506 = vst [vmem:[%s224 + $0x18] sm:$0xff] %v490
      %507 = vst [vmem:[%s224 + $0x20] sm:$0xff] %v491
      %508 = vst [vmem:[%s224 + $0x28] sm:$0xff] %v492
      %509 = vst [vmem:[%s224 + $0x30] sm:$0xff] %v493
      %510 = vst [vmem:[%s224 + $0x38] sm:$0xff] %v494
      %511 = vst [vmem:[%s224 + $0x40] sm:$0xff] %v495
      %512 = vst [vmem:[%s224 + $0x48] sm:$0xff] %v496
      %513 = vst [vmem:[%s224 + $0x50] sm:$0xff] %v497
      %514 = vst [vmem:[%s224 + $0x58] sm:$0xff] %v498
      %515 = vst [vmem:[%s224 + $0x60] sm:$0x3f] %v499
      %516 = vst [vmem:[%s224 + $0x68] sm:$0x3f] %v500
      %517 = vst [vmem:[%s224 + $0x70] sm:$0x3f] %v501
      %518 = vst [vmem:[%s224 + $0x78] sm:$0x3f] %v502
      %p519 = scmp.lt.s32.totalorder %s16, 1
      %s520 = scalar_select %p519, %s16, 1
      %s521 = smul.addr %s520, 16
      %s522 = smul.addr %s521, 8
      %s523 = scalar_lea.vmem %s5, %s522
      // Predicated region
      $region41: #{tpu_custom_call.1} parent=39 // pred_check
        %p524 = pneg %p144
      $region42: #{tpu_custom_call.1} parent=39 // pred_check_branch
        %526 = sbr.rel (%p524) target = $region44
      $region43: #{tpu_custom_call.1} parent=39 // pred_region
        _
      $region44: #{tpu_custom_call.1} parent=39 // pred_fallthru
        _
    $region40: #{tpu_custom_call.1} parent=5 // pred_fallthru
      _
    %p527 = scmp.le.s32.totalorder 2, %s11
    // Predicated region
    $region45: #{tpu_custom_call.1} parent=5 // pred_check
      %p528 = pneg %p527
    $region46: #{tpu_custom_call.1} parent=5 // pred_check_branch
      %530 = sbr.rel (%p528) target = $region48
    $region47: #{tpu_custom_call.1} parent=5 // pred_region
      %s531 = ssub.s32 %s11, 2
      // Predicated region
      $region49: #{tpu_custom_call.1} parent=47 // pred_check
        %p532 = pneg %p150
      $region50: #{tpu_custom_call.1} parent=47 // pred_check_branch
        %534 = sbr.rel (%p532) target = $region52
      $region51: #{tpu_custom_call.1} parent=47 // pred_region
        %p535 = scmp.lt.s32.totalorder %s17, 1
        %s536 = scalar_select %p535, %s17, 1
        %s537 = smul.addr %s536, 16
        %s538 = smul.addr %s537, 8
        %s539 = scalar_lea.vmem %s5, %s538
      $region52: #{tpu_custom_call.1} parent=47 // pred_fallthru
        _
    $region48: #{tpu_custom_call.1} parent=5 // pred_fallthru
      _
  $region6: #{tpu_custom_call.1} parent=0 // loop_footer
    %s15 = sadd.s32 1, %s11
  $region7: #{tpu_custom_call.1} parent=0 // loop_footer_branch
    %10 = sbr.rel target = $region3
  $region8: #{tpu_custom_call.1} parent=0 // loop_exit
    _

</llo_original>
